<compile_context>
chip_gen: v7x
topology: tpu7x:2x2x1
jax: 0.10.0
libtpu: 0.0.40
codegen_flags: <defaults>
</compile_context>

<pallas_src>
import functools

import jax
import jax.numpy as jnp
from jax.experimental import pallas as pl
from jax.experimental.pallas import tpu as pltpu


# ----------------------------------------------------------------------------
# Pallas kernel: fused attention-gate over one (batch, spatial-tile) block.
# ----------------------------------------------------------------------------
def _attention_block_kernel(
    g_ref,       # (1, Cl, TS)   g block, channels on sublanes, spatial on lanes
    x_ref,       # (1, Cg, TS)   x block
    wgT_ref,     # (F_int, Cl)   folded conv+BN weight (transposed) for W_g
    wxT_ref,     # (F_int, Cg)   folded conv+BN weight (transposed) for W_x
    bfused_ref,  # (F_int, 1)    bg_eff + bx_eff (f32)
    wpsi_ref,    # (F_int, 1)    folded psi conv+BN weight (column, f32)
    bpsi_ref,    # (1, 1)        folded psi bias (f32)
    out_ref,     # (1, Cg, TS)
    *,
    use_mxu,     # static: MXU matmul vs. unrolled VPU MAC for tiny channels
):
    x = x_ref[0]                                     # (Cg, TS), native dtype

    if use_mxu:
        # 1x1 conv == matmul over the channel axis (MXU), f32 accumulation;
        # activations stay in their native dtype.
        pre = (
            jnp.dot(wgT_ref[...], g_ref[0], preferred_element_type=jnp.float32)
            + jnp.dot(wxT_ref[...], x, preferred_element_type=jnp.float32)
            + bfused_ref[...]
        )                                            # (F_int, TS) f32
    else:
        # Tiny-channel path: K=4..16, M=8..32 matmuls are <0.1% MXU utilization,
        # so unroll them as a handful of VPU broadcast multiply-adds instead.
        g = g_ref[0]                                 # (Cl, TS)
        wgT = wgT_ref[...]                           # (F_int, Cl)
        wxT = wxT_ref[...]                           # (F_int, Cg)
        pre = bfused_ref[...]                        # (F_int, 1), broadcasts
        for c in range(g.shape[0]):
            pre = pre + wgT[:, c:c + 1] * g[c:c + 1, :].astype(jnp.float32)
        for c in range(x.shape[0]):
            pre = pre + wxT[:, c:c + 1] * x[c:c + 1, :].astype(jnp.float32)

    p = jnp.maximum(pre, 0.0)                        # ReLU, (F_int, TS) f32

    # psi: contract over F_int (sublane axis) on VPU + XLU instead of a
    # 1-sublane-wide MXU result; scalar bias folded from psi's conv+BN.
    psi_logit = jnp.sum(p * wpsi_ref[...], axis=0, keepdims=True) + bpsi_ref[0, 0]
    psi = jax.nn.sigmoid(psi_logit)                  # (1, TS) f32

    out_ref[0] = (x * psi.astype(x.dtype)).astype(out_ref.dtype)


# ----------------------------------------------------------------------------
# BN folding (inference semantics, running stats).
# ----------------------------------------------------------------------------
def _fold_conv_bn(w, b, gamma, beta, mean, var, eps=1e-5):
    """Fold BatchNorm into a 1x1 conv stored as (C_in, C_out) matmul weight.

    Returns (w_eff, b_eff) such that x @ w_eff + b_eff == BN(Conv1x1(x)).
    """
    scale = gamma / jnp.sqrt(var + eps)              # (C_out,)
    w_eff = w * scale[None, :]
    b_eff = (b - mean) * scale + beta
    return w_eff, b_eff


# ----------------------------------------------------------------------------
# Static config: tile size, VMEM limit, MXU-vs-VPU gate (plain Python).
# ----------------------------------------------------------------------------
def _round_up(x, m):
    return -(-x // m) * m


def _round_down(x, m):
    return (x // m) * m


def _vmem_capacity_bytes():
    try:
        info = pltpu.get_tpu_info()
        cap = getattr(info, "vmem_capacity_bytes", None)
        if cap:
            return int(cap)
    except Exception:
        pass
    return 64 << 20                                   # conservative: v7x per-TC VMEM


def _choose_config(N, Cl, Cg, F_int, HW, act_itemsize):
    phys = _vmem_capacity_bytes()
    # Leave headroom for Mosaic internal scratch: ~52 MiB on v7x (64 MiB phys),
    # ~116 MiB on v5e/v6e (128 MiB phys).
    vmem_cap = max(24 << 20, phys - (12 << 20))

    # Bytes per spatial lane per grid step: g block + x block + out block.
    per_lane = act_itemsize * (Cl + 2 * Cg)
    weight_bytes = 4 * (F_int * (Cl + Cg + 2) + 1)
    # Budget for the (double-buffered) spatial blocks; keep a couple MiB slack.
    block_budget = max(2 * 128 * per_lane, vmem_cap - weight_bytes - (2 << 20))

    if HW <= 128:
        tile = HW                                     # full-dim block
    else:
        tile_cap = max(128, _round_down(block_budget // (2 * per_lane), 128))
        tile = min(tile_cap, _round_down(HW, 128))
        if N == 1:
            # Keep >= 2 grid steps so both TensorCores get work on dual-TC v7x.
            tile = min(tile, max(128, _round_up(-(-HW // 2), 128)))

    needed = 2 * tile * per_lane + weight_bytes
    vmem_limit = int(min(vmem_cap, max(needed + (4 << 20), 32 << 20)))

    # MXU only pays off for non-trivial channel counts.
    use_mxu = (Cl + Cg > 16) or (F_int > 32)
    return tile, vmem_limit, use_mxu


# ----------------------------------------------------------------------------
# Jitted wrapper: BN folding + NCHW-native tiling + pallas_call.
# ----------------------------------------------------------------------------
@functools.partial(jax.jit, static_argnames=("tile", "vmem_limit", "use_mxu"))
def _attention_block_call(g_nchw, x_nchw, params, *, tile, vmem_limit, use_mxu):
    N, Cg, H, W = x_nchw.shape
    Cl = g_nchw.shape[1]
    HW = H * W

    # ---- fold BN into the three 1x1 convs (inference semantics) -------------
    wg_eff, bg_eff = _fold_conv_bn(
        params["wg"], params["bg"],
        params["bn_g_gamma"], params["bn_g_beta"],
        params["bn_g_mean"], params["bn_g_var"])
    wx_eff, bx_eff = _fold_conv_bn(
        params["wx"], params["bx"],
        params["bn_x_gamma"], params["bn_x_beta"],
        params["bn_x_mean"], params["bn_x_var"])
    wpsi_eff, bpsi_eff = _fold_conv_bn(
        params["wpsi"], params["bpsi"],
        params["bn_psi_gamma"], params["bn_psi_beta"],
        params["bn_psi_mean"], params["bn_psi_var"])

    F_int = wg_eff.shape[1]
    # Weights for the matmul in the activation dtype (avoids upcasting the big
    # activation blocks); bias / psi math stays f32.
    wgT = wg_eff.T.astype(g_nchw.dtype)               # (F_int, Cl)
    wxT = wx_eff.T.astype(x_nchw.dtype)               # (F_int, Cg)
    b_fused = (bg_eff + bx_eff).reshape(F_int, 1).astype(jnp.float32)
    wpsi_col = wpsi_eff.reshape(F_int, 1).astype(jnp.float32)
    bpsi = bpsi_eff.reshape(1, 1).astype(jnp.float32)

    # ---- NCHW -> (N, C, HW): free reshape, no transpose, no padding ----------
    g3 = g_nchw.reshape(N, Cl, HW)
    x3 = x_nchw.reshape(N, Cg, HW)

    grid = (N, pl.cdiv(HW, tile))                     # ragged tail handled by Pallas

    kernel = functools.partial(_attention_block_kernel, use_mxu=use_mxu)
    const = lambda n, s: (0, 0)                       # untiled small operands

    out3 = pl.pallas_call(
        kernel,
        out_shape=jax.ShapeDtypeStruct((N, Cg, HW), x_nchw.dtype),
        grid=grid,
        in_specs=[
            pl.BlockSpec((1, Cl, tile), lambda n, s: (n, 0, s)),   # g block
            pl.BlockSpec((1, Cg, tile), lambda n, s: (n, 0, s)),   # x block
            pl.BlockSpec((F_int, Cl), const),                      # WgT
            pl.BlockSpec((F_int, Cg), const),                      # WxT
            pl.BlockSpec((F_int, 1), const),                       # fused bias
            pl.BlockSpec((F_int, 1), const),                       # wpsi column
            pl.BlockSpec((1, 1), const),                           # bpsi scalar
        ],
        out_specs=pl.BlockSpec((1, Cg, tile), lambda n, s: (n, 0, s)),
        compiler_params=pltpu.CompilerParams(
            dimension_semantics=("parallel", "parallel"),
            vmem_limit_bytes=vmem_limit),
        # NOTE: if steps are still latency-bound for tiny layers, a cheap
        # experiment is pipeline_mode=pl.Buffered(3) on the g/x in_specs.
    )(g3, x3, wgT, wxT, b_fused, wpsi_col, bpsi)

    return out3.reshape(N, Cg, H, W)                  # free reshape back to NCHW


def attention_block_pallas(g_nchw, x_nchw, params):
    N, Cg, H, W = x_nchw.shape
    Cl = g_nchw.shape[1]
    F_int = params["wg"].shape[1]
    tile, vmem_limit, use_mxu = _choose_config(
        N, Cl, Cg, F_int, H * W, jnp.dtype(x_nchw.dtype).itemsize)
    return _attention_block_call(
        g_nchw, x_nchw, params,
        tile=tile, vmem_limit=vmem_limit, use_mxu=use_mxu)


# ----------------------------------------------------------------------------
# Pure-JAX reference (same math, no Pallas) for a correctness check.
# ----------------------------------------------------------------------------
def attention_block_ref(g_nchw, x_nchw, params, eps=1e-5):
    def conv1x1_bn(x, w, b, gamma, beta, mean, var):
        # x: (N, C_in, H, W); w: (C_in, C_out)
        y = jnp.einsum("nchw,cf->nfhw", x, w) + b[None, :, None, None]
        scale = gamma / jnp.sqrt(var + eps)
        return (y - mean[None, :, None, None]) * scale[None, :, None, None] \
               + beta[None, :, None, None]

    g1 = conv1x1_bn(g_nchw, params["wg"], params["bg"],
                    params["bn_g_gamma"], params["bn_g_beta"],
                    params["bn_g_mean"], params["bn_g_var"])
    x1 = conv1x1_bn(x_nchw, params["wx"], params["bx"],
                    params["bn_x_gamma"], params["bn_x_beta"],
                    params["bn_x_mean"], params["bn_x_var"])
    p = jnp.maximum(g1 + x1, 0.0)
    psi = conv1x1_bn(p, params["wpsi"], params["bpsi"],
                     params["bn_psi_gamma"], params["bn_psi_beta"],
                     params["bn_psi_mean"], params["bn_psi_var"])
    psi = jax.nn.sigmoid(psi)
    return x_nchw * psi


# ----------------------------------------------------------------------------
# Deterministic parameter init + demo run.
# ----------------------------------------------------------------------------
def make_params(key, F_g, F_l, F_int):
    ks = jax.random.split(key, 8)
    # Conv weights stored channels-last as (C_in, C_out) for matmul form.
    wg = 0.2 * jax.random.normal(ks[0], (F_l, F_int), jnp.float32)
    bg = 0.1 * jax.random.normal(ks[1], (F_int,), jnp.float32)
    wx = 0.2 * jax.random.normal(ks[2], (F_g, F_int), jnp.float32)
    bx = 0.1 * jax.random.normal(ks[3], (F_int,), jnp.float32)
    wpsi = 0.2 * jax.random.normal(ks[4], (F_int, 1), jnp.float32)
    bpsi = 0.1 * jax.random.normal(ks[5], (1,), jnp.float32)
    # BatchNorm (inference: running stats), deterministic & non-trivial.
    # TODO(synk): training-mode BN (per-batch statistics) not implemented;
    # inference semantics with running stats are used instead.
    bn = lambda k, c, lo, hi: lo + (hi - lo) * jax.random.uniform(k, (c,), jnp.float32)
    kb = jax.random.split(ks[6], 12)
    params = dict(
        wg=wg, bg=bg, wx=wx, bx=bx, wpsi=wpsi, bpsi=bpsi,
        bn_g_gamma=bn(kb[0], F_int, 0.8, 1.2), bn_g_beta=bn(kb[1], F_int, -0.1, 0.1),
        bn_g_mean=bn(kb[2], F_int, -0.2, 0.2), bn_g_var=bn(kb[3], F_int, 0.5, 1.5),
        bn_x_gamma=bn(kb[4], F_int, 0.8, 1.2), bn_x_beta=bn(kb[5], F_int, -0.1, 0.1),
        bn_x_mean=bn(kb[6], F_int, -0.2, 0.2), bn_x_var=bn(kb[7], F_int, 0.5, 1.5),
        bn_psi_gamma=bn(kb[8], 1, 0.8, 1.2), bn_psi_beta=bn(kb[9], 1, -0.1, 0.1),
        bn_psi_mean=bn(kb[10], 1, -0.2, 0.2), bn_psi_var=bn(kb[11], 1, 0.5, 1.5),
    )
    return params


if __name__ == "__main__":
    key = jax.random.PRNGKey(0)

    cases = [
        # (N, F_g (= x channels), F_l (= g channels), F_int, H, W)
        (2, 4, 4, 8, 16, 16),      # module-sized demo: tiny channels, VPU path
        (1, 64, 48, 32, 20, 20),   # MXU path, ragged HW=400, N==1 tile split
    ]

    for idx, (N, F_g, F_l, F_int, H, W) in enumerate(cases):
        key, kg, kx, kp = jax.random.split(key, 4)
        g = jax.random.normal(kg, (N, F_l, H, W), jnp.float32)
        x = jax.random.normal(kx, (N, F_g, H, W), jnp.float32)
        params = make_params(kp, F_g, F_l, F_int)

        out = jax.block_until_ready(attention_block_pallas(g, x, params))
        ref = attention_block_ref(g, x, params)

        assert out.shape == x.shape
        max_err = jnp.max(jnp.abs(out - ref))
        assert jnp.allclose(out, ref, atol=1e-4, rtol=1e-4), \
            f"case {idx}: max abs err = {max_err}"

    print("KERNEL_OK")
</pallas_src>

<mosaic_0001>
module attributes {stable_mosaic.version = 11 : i64} {
  func.func @_attention_block_kernel(%arg0: i32, %arg1: i32, %arg2: memref<1x4x256xf32, #tpu.memory_space<vmem>>, %arg3: memref<1x4x256xf32, #tpu.memory_space<vmem>>, %arg4: memref<8x4xf32, #tpu.memory_space<vmem>>, %arg5: memref<8x4xf32, #tpu.memory_space<vmem>>, %arg6: memref<8x1xf32, #tpu.memory_space<vmem>>, %arg7: memref<8x1xf32, #tpu.memory_space<vmem>>, %arg8: memref<1x1xf32, #tpu.memory_space<vmem>>, %arg9: memref<1x4x256xf32, #tpu.memory_space<vmem>>) attributes {dimension_semantics = [#tpu.dimension_semantics<parallel>, #tpu.dimension_semantics<parallel>], iteration_bounds = array<i64: 2, 1>, scalar_prefetch = 0 : i64, scratch_operands = 0 : i64, tpu.core_type = #tpu.core_type<tc>, window_params = [{transform_indices = @transform_0, window_bounds = array<i64: 1, 4, 256>}, {transform_indices = @transform_1, window_bounds = array<i64: 1, 4, 256>}, {pipeline_mode = #tpu.pipeline_mode<synchronous>, transform_indices = @transform_2, window_bounds = array<i64: 8, 4>}, {pipeline_mode = #tpu.pipeline_mode<synchronous>, transform_indices = @transform_3, window_bounds = array<i64: 8, 4>}, {pipeline_mode = #tpu.pipeline_mode<synchronous>, transform_indices = @transform_4, window_bounds = array<i64: 8, 1>}, {pipeline_mode = #tpu.pipeline_mode<synchronous>, transform_indices = @transform_5, window_bounds = array<i64: 8, 1>}, {pipeline_mode = #tpu.pipeline_mode<synchronous>, transform_indices = @transform_6, window_bounds = array<i64: 1, 1>}, {transform_indices = @transform_7, window_bounds = array<i64: 1, 4, 256>}]} {
    %c0 = arith.constant 0 : index
    %c0_0 = arith.constant 0 : index
    %c0_1 = arith.constant 0 : index
    %0 = vector.load %arg3[%c0, %c0_0, %c0_1] : memref<1x4x256xf32, #tpu.memory_space<vmem>>, vector<1x4x256xf32>
    %1 = vector.shape_cast %0 : vector<1x4x256xf32> to vector<4x256xf32>
    %c0_2 = arith.constant 0 : index
    %c0_3 = arith.constant 0 : index
    %c0_4 = arith.constant 0 : index
    %2 = vector.load %arg2[%c0_2, %c0_3, %c0_4] : memref<1x4x256xf32, #tpu.memory_space<vmem>>, vector<1x4x256xf32>
    %3 = vector.shape_cast %2 : vector<1x4x256xf32> to vector<4x256xf32>
    %c0_5 = arith.constant 0 : index
    %c0_6 = arith.constant 0 : index
    %4 = vector.load %arg4[%c0_5, %c0_6] : memref<8x4xf32, #tpu.memory_space<vmem>>, vector<8x4xf32>
    %c0_7 = arith.constant 0 : index
    %c0_8 = arith.constant 0 : index
    %5 = vector.load %arg5[%c0_7, %c0_8] : memref<8x4xf32, #tpu.memory_space<vmem>>, vector<8x4xf32>
    %c0_9 = arith.constant 0 : index
    %c0_10 = arith.constant 0 : index
    %6 = vector.load %arg6[%c0_9, %c0_10] : memref<8x1xf32, #tpu.memory_space<vmem>>, vector<8x1xf32>
    %7 = vector.extract_strided_slice %4 {offsets = [0, 0], sizes = [8, 1], strides = [1, 1]} : vector<8x4xf32> to vector<8x1xf32>
    %8 = vector.extract_strided_slice %3 {offsets = [0, 0], sizes = [1, 256], strides = [1, 1]} : vector<4x256xf32> to vector<1x256xf32>
    %9 = vector.broadcast %7 : vector<8x1xf32> to vector<8x256xf32>
    %10 = vector.broadcast %8 : vector<1x256xf32> to vector<8x256xf32>
    %11 = arith.mulf %9, %10 : vector<8x256xf32>
    %12 = vector.broadcast %6 : vector<8x1xf32> to vector<8x256xf32>
    %13 = arith.addf %12, %11 : vector<8x256xf32>
    %14 = vector.extract_strided_slice %4 {offsets = [0, 1], sizes = [8, 1], strides = [1, 1]} : vector<8x4xf32> to vector<8x1xf32>
    %15 = vector.extract_strided_slice %3 {offsets = [1, 0], sizes = [1, 256], strides = [1, 1]} : vector<4x256xf32> to vector<1x256xf32>
    %16 = vector.broadcast %14 : vector<8x1xf32> to vector<8x256xf32>
    %17 = vector.broadcast %15 : vector<1x256xf32> to vector<8x256xf32>
    %18 = arith.mulf %16, %17 : vector<8x256xf32>
    %19 = arith.addf %13, %18 : vector<8x256xf32>
    %20 = vector.extract_strided_slice %4 {offsets = [0, 2], sizes = [8, 1], strides = [1, 1]} : vector<8x4xf32> to vector<8x1xf32>
    %21 = vector.extract_strided_slice %3 {offsets = [2, 0], sizes = [1, 256], strides = [1, 1]} : vector<4x256xf32> to vector<1x256xf32>
    %22 = vector.broadcast %20 : vector<8x1xf32> to vector<8x256xf32>
    %23 = vector.broadcast %21 : vector<1x256xf32> to vector<8x256xf32>
    %24 = arith.mulf %22, %23 : vector<8x256xf32>
    %25 = arith.addf %19, %24 : vector<8x256xf32>
    %26 = vector.extract_strided_slice %4 {offsets = [0, 3], sizes = [8, 1], strides = [1, 1]} : vector<8x4xf32> to vector<8x1xf32>
    %27 = vector.extract_strided_slice %3 {offsets = [3, 0], sizes = [1, 256], strides = [1, 1]} : vector<4x256xf32> to vector<1x256xf32>
    %28 = vector.broadcast %26 : vector<8x1xf32> to vector<8x256xf32>
    %29 = vector.broadcast %27 : vector<1x256xf32> to vector<8x256xf32>
    %30 = arith.mulf %28, %29 : vector<8x256xf32>
    %31 = arith.addf %25, %30 : vector<8x256xf32>
    %32 = vector.extract_strided_slice %5 {offsets = [0, 0], sizes = [8, 1], strides = [1, 1]} : vector<8x4xf32> to vector<8x1xf32>
    %33 = vector.extract_strided_slice %1 {offsets = [0, 0], sizes = [1, 256], strides = [1, 1]} : vector<4x256xf32> to vector<1x256xf32>
    %34 = vector.broadcast %32 : vector<8x1xf32> to vector<8x256xf32>
    %35 = vector.broadcast %33 : vector<1x256xf32> to vector<8x256xf32>
    %36 = arith.mulf %34, %35 : vector<8x256xf32>
    %37 = arith.addf %31, %36 : vector<8x256xf32>
    %38 = vector.extract_strided_slice %5 {offsets = [0, 1], sizes = [8, 1], strides = [1, 1]} : vector<8x4xf32> to vector<8x1xf32>
    %39 = vector.extract_strided_slice %1 {offsets = [1, 0], sizes = [1, 256], strides = [1, 1]} : vector<4x256xf32> to vector<1x256xf32>
    %40 = vector.broadcast %38 : vector<8x1xf32> to vector<8x256xf32>
    %41 = vector.broadcast %39 : vector<1x256xf32> to vector<8x256xf32>
    %42 = arith.mulf %40, %41 : vector<8x256xf32>
    %43 = arith.addf %37, %42 : vector<8x256xf32>
    %44 = vector.extract_strided_slice %5 {offsets = [0, 2], sizes = [8, 1], strides = [1, 1]} : vector<8x4xf32> to vector<8x1xf32>
    %45 = vector.extract_strided_slice %1 {offsets = [2, 0], sizes = [1, 256], strides = [1, 1]} : vector<4x256xf32> to vector<1x256xf32>
    %46 = vector.broadcast %44 : vector<8x1xf32> to vector<8x256xf32>
    %47 = vector.broadcast %45 : vector<1x256xf32> to vector<8x256xf32>
    %48 = arith.mulf %46, %47 : vector<8x256xf32>
    %49 = arith.addf %43, %48 : vector<8x256xf32>
    %50 = vector.extract_strided_slice %5 {offsets = [0, 3], sizes = [8, 1], strides = [1, 1]} : vector<8x4xf32> to vector<8x1xf32>
    %51 = vector.extract_strided_slice %1 {offsets = [3, 0], sizes = [1, 256], strides = [1, 1]} : vector<4x256xf32> to vector<1x256xf32>
    %52 = vector.broadcast %50 : vector<8x1xf32> to vector<8x256xf32>
    %53 = vector.broadcast %51 : vector<1x256xf32> to vector<8x256xf32>
    %54 = arith.mulf %52, %53 : vector<8x256xf32>
    %55 = arith.addf %49, %54 : vector<8x256xf32>
    %cst = arith.constant 0.000000e+00 : f32
    %56 = vector.broadcast %cst : f32 to vector<8x256xf32>
    %57 = arith.maximumf %55, %56 : vector<8x256xf32>
    %c0_11 = arith.constant 0 : index
    %c0_12 = arith.constant 0 : index
    %58 = vector.load %arg7[%c0_11, %c0_12] : memref<8x1xf32, #tpu.memory_space<vmem>>, vector<8x1xf32>
    %59 = vector.broadcast %58 : vector<8x1xf32> to vector<8x256xf32>
    %60 = arith.mulf %57, %59 : vector<8x256xf32>
    %cst_13 = arith.constant dense<0.000000e+00> : vector<256xf32>
    %61 = vector.multi_reduction <add>, %60, %cst_13 [0] : vector<8x256xf32> to vector<256xf32>
    %62 = vector.shape_cast %61 : vector<256xf32> to vector<1x256xf32>
    %c0_14 = arith.constant 0 : index
    %c0_15 = arith.constant 0 : index
    %63 = vector.load %arg8[%c0_14, %c0_15] : memref<1x1xf32, #tpu.memory_space<vmem>>, vector<1x1xf32>
    %64 = vector.extract %63[0, 0] : f32 from vector<1x1xf32>
    %65 = vector.broadcast %64 : f32 to vector<1x256xf32>
    %66 = arith.addf %62, %65 : vector<1x256xf32>
    %67 = arith.negf %66 : vector<1x256xf32>
    %68 = math.exp %67 : vector<1x256xf32>
    %cst_16 = arith.constant 1.000000e+00 : f32
    %69 = vector.broadcast %cst_16 : f32 to vector<1x256xf32>
    %70 = arith.addf %69, %68 : vector<1x256xf32>
    %71 = arith.divf %69, %70 : vector<1x256xf32>
    %72 = vector.broadcast %71 : vector<1x256xf32> to vector<4x256xf32>
    %73 = arith.mulf %1, %72 : vector<4x256xf32>
    %c0_17 = arith.constant 0 : index
    %c0_18 = arith.constant 0 : index
    %c0_19 = arith.constant 0 : index
    %74 = vector.load %arg9[%c0_17, %c0_18, %c0_19] : memref<1x4x256xf32, #tpu.memory_space<vmem>>, vector<1x4x256xf32>
    %75 = vector.shape_cast %74 : vector<1x4x256xf32> to vector<4x256xf32>
    %76 = vector.shape_cast %73 : vector<4x256xf32> to vector<1x4x256xf32>
    tpu.vector_store %arg9[%c0_17, %c0_18, %c0_19], %76 {strides = array<i32>} : memref<1x4x256xf32, #tpu.memory_space<vmem>>, vector<1x4x256xf32>,
    return
  }
  func.func @transform_0(%arg0: i32, %arg1: i32) -> (i32, i32, i32) {
    %c0_i32 = arith.constant 0 : i32
    %c0_i32_0 = arith.constant 0 : i32
    return %arg0, %c0_i32, %arg1 : i32, i32, i32
  }
  func.func @transform_1(%arg0: i32, %arg1: i32) -> (i32, i32, i32) {
    %c0_i32 = arith.constant 0 : i32
    %c0_i32_0 = arith.constant 0 : i32
    return %arg0, %c0_i32, %arg1 : i32, i32, i32
  }
  func.func @transform_2(%arg0: i32, %arg1: i32) -> (i32, i32) {
    %c0_i32 = arith.constant 0 : i32
    %c0_i32_0 = arith.constant 0 : i32
    %c0_i32_1 = arith.constant 0 : i32
    return %c0_i32, %c0_i32_0 : i32, i32
  }
  func.func @transform_3(%arg0: i32, %arg1: i32) -> (i32, i32) {
    %c0_i32 = arith.constant 0 : i32
    %c0_i32_0 = arith.constant 0 : i32
    %c0_i32_1 = arith.constant 0 : i32
    return %c0_i32, %c0_i32_0 : i32, i32
  }
  func.func @transform_4(%arg0: i32, %arg1: i32) -> (i32, i32) {
    %c0_i32 = arith.constant 0 : i32
    %c0_i32_0 = arith.constant 0 : i32
    %c0_i32_1 = arith.constant 0 : i32
    return %c0_i32, %c0_i32_0 : i32, i32
  }
  func.func @transform_5(%arg0: i32, %arg1: i32) -> (i32, i32) {
    %c0_i32 = arith.constant 0 : i32
    %c0_i32_0 = arith.constant 0 : i32
    %c0_i32_1 = arith.constant 0 : i32
    return %c0_i32, %c0_i32_0 : i32, i32
  }
  func.func @transform_6(%arg0: i32, %arg1: i32) -> (i32, i32) {
    %c0_i32 = arith.constant 0 : i32
    %c0_i32_0 = arith.constant 0 : i32
    %c0_i32_1 = arith.constant 0 : i32
    return %c0_i32, %c0_i32_0 : i32, i32
  }
  func.func @transform_7(%arg0: i32, %arg1: i32) -> (i32, i32, i32) {
    %c0_i32 = arith.constant 0 : i32
    %c0_i32_0 = arith.constant 0 : i32
    return %arg0, %c0_i32, %arg1 : i32, i32, i32
  }
}

</mosaic_0001>

<llo_original>
// kernel: _attention_block_call.1
$region0: #{_attention_block_call.1}
  #allocation0 [shape = 'u32[]', space=smem, size = 0x4, offset = 0x4, fixed_abs, tag = 'smem constant byte address 0x4 - core index']
  #allocation1 [shape = 'u32[144,128]{1,0:T(1,128)}', space=vmem, size = 0x12000, scoped, tag = 'internal scratch']
  #allocation2 [shape = 'f32[1,1]{1,0:T(1,128)S(1)}', space=vmem, size = 0x200, scoped, tag = 'scoped memory for _attention_block_call.1']
  %s0 = inlined_call_operand.vmem [shape: f32[2,4,256], index: 0, kind: input, shape index: {}]
  %s1 = inlined_call_operand.vmem [shape: f32[2,4,256], index: 1, kind: input, shape index: {}]
  %s2 = inlined_call_operand.vmem [shape: f32[8,4], index: 2, kind: input, shape index: {}]
  %s3 = inlined_call_operand.vmem [shape: f32[8,4], index: 3, kind: input, shape index: {}]
  %s4 = inlined_call_operand.vmem [shape: f32[8,1], index: 4, kind: input, shape index: {}]
  %s5 = inlined_call_operand.vmem [shape: f32[8,1], index: 5, kind: input, shape index: {}]
  %s6 = inlined_call_operand.<no memory space> [shape: f32[1,1], index: 6, kind: input, shape index: {}]
  %s7 = inlined_call_operand.vmem [shape: f32[2,4,256], index: 7, kind: output, shape index: {}]
  %s8 = sld [smem:[#allocation0]]
  $region61: #{_attention_block_call.1} parent=0
    _
  %s10 = ssub.s32 1, %s8
  %s11 = scalar_select 0, %s10, %s8
  %v12 = vstv %s6
  %13 = vst [vmem:[#allocation2] sm:$0x1] %v12
  loop: start=0, step=1, limit=4
  $region2: #{_attention_block_call.1} parent=0 // loop_pre_header
    _
  $region3: #{_attention_block_call.1} parent=0 // loop_header
    %s15 = sphi 0, %s19
    %p16 = scmp.ge.s32.totalorder %s15, 4
    %s22 = sphi 0, %s34
    %s23 = sphi 0, %s30
    %s24 = sphi 0, %s22
    %s25 = sphi 0, %s23
    %s26 = sphi 0, %s24
    %s27 = sphi 0, %s25
    %s39 = sphi 0, %s41
    %s42 = sphi 0, %s39
    %s43 = sphi 0, %s42
    %s59 = sphi 0, %s43
    %s67 = sphi 0, %s69
    %s70 = sphi 0, %s67
    %s71 = sphi 0, %s70
    %s87 = sphi 0, %s71
    %s91 = sphi 0, %s91
    %s93 = sphi 0, %s91
    %s94 = sphi 0, %s93
    %s108 = sphi 0, %s94
    %s112 = sphi 0, %s112
    %s114 = sphi 0, %s112
    %s115 = sphi 0, %s114
    %s129 = sphi 0, %s115
    %s133 = sphi 0, %s133
    %s135 = sphi 0, %s133
    %s136 = sphi 0, %s135
    %s150 = sphi 0, %s136
    %s154 = sphi 0, %s154
    %s156 = sphi 0, %s154
    %s157 = sphi 0, %s156
    %s171 = sphi 0, %s157
    %s175 = sphi 0, %s175
    %s177 = sphi 0, %s175
    %s178 = sphi 0, %s177
    %s192 = sphi 0, %s178
    %s200 = sphi 0, %s202
    %s203 = sphi 0, %s200
    %s204 = sphi 0, %s203
    %s220 = sphi 0, %s204
  $region4: #{_attention_block_call.1} parent=0 // loop_header_branch
    %18 = sbr.rel (%p16) target = $region8
  $region5: #{_attention_block_call.1} parent=0 // loop_body
    %s20 = ssub.s32 %s15, 1
    %s21 = ssub.s32 %s15, 2
    %s28 = sadd.s32 1, %s23
    %p29 = scmp.ge.s32.totalorder %s28, 1
    %s30 = scalar_select %p29, 0, %s28
    %s31 = sadd.s32 1, %s22
    %s32 = scalar_select %p29, %s31, %s22
    %p33 = scmp.ge.s32.totalorder %s32, 2
    %s34 = scalar_select %p33, 0, %s32
    %s35 = ssub.s32 %s22, %s34
    %s36 = ssub.s32 %s23, %s30
    %s37 = sor.u32 %s35, %s36
    %p38 = scmp.eq.s32.totalorder %s37, 0
    %s40 = sadd.s32 %s39, 1
    %s41 = scalar_select %p38, %s39, %s40
    %p44 = pneg %p38
    %p45 = scmp.eq.s32.totalorder %s15, 1
    %p46 = por %p44, %p45
    %p47 = scmp.ne.s32.totalorder %s39, %s42
    %p48 = scmp.eq.s32.totalorder %s15, 0
    %p49 = por %p47, %p48
    %p50 = scmp.ne.s32.totalorder %s39, %s42
    %p51 = scmp.eq.s32.totalorder %s20, 1
    %p52 = por %p50, %p51
    %p53 = scmp.ne.s32.totalorder %s42, %s43
    %p54 = scmp.eq.s32.totalorder %s20, 0
    %p55 = por %p53, %p54
    %p56 = scmp.ne.s32.totalorder %s42, %s43
    %p57 = scmp.eq.s32.totalorder %s21, 1
    %p58 = por %p56, %p57
    %p60 = scmp.ne.s32.totalorder %s43, %s59
    %p61 = scmp.eq.s32.totalorder %s21, 0
    %p62 = por %p60, %p61
    %s63 = ssub.s32 %s22, %s34
    %s64 = ssub.s32 %s23, %s30
    %s65 = sor.u32 %s63, %s64
    %p66 = scmp.eq.s32.totalorder %s65, 0
    %s68 = sadd.s32 %s67, 1
    %s69 = scalar_select %p66, %s67, %s68
    %p72 = pneg %p66
    %p73 = scmp.eq.s32.totalorder %s15, 1
    %p74 = por %p72, %p73
    %p75 = scmp.ne.s32.totalorder %s67, %s70
    %p76 = scmp.eq.s32.totalorder %s15, 0
    %p77 = por %p75, %p76
    %p78 = scmp.ne.s32.totalorder %s67, %s70
    %p79 = scmp.eq.s32.totalorder %s20, 1
    %p80 = por %p78, %p79
    %p81 = scmp.ne.s32.totalorder %s70, %s71
    %p82 = scmp.eq.s32.totalorder %s20, 0
    %p83 = por %p81, %p82
    %p84 = scmp.ne.s32.totalorder %s70, %s71
    %p85 = scmp.eq.s32.totalorder %s21, 1
    %p86 = por %p84, %p85
    %p88 = scmp.ne.s32.totalorder %s71, %s87
    %p89 = scmp.eq.s32.totalorder %s21, 0
    %p90 = por %p88, %p89
    %s92 = sadd.s32 %s91, 1
    %p95 = scmp.eq.s32.totalorder %s15, 1
    %p96 = scmp.ne.s32.totalorder %s91, %s93
    %p97 = scmp.eq.s32.totalorder %s15, 0
    %p98 = por %p96, %p97
    %p99 = scmp.ne.s32.totalorder %s91, %s93
    %p100 = scmp.eq.s32.totalorder %s20, 1
    %p101 = por %p99, %p100
    %p102 = scmp.ne.s32.totalorder %s93, %s94
    %p103 = scmp.eq.s32.totalorder %s20, 0
    %p104 = por %p102, %p103
    %p105 = scmp.ne.s32.totalorder %s93, %s94
    %p106 = scmp.eq.s32.totalorder %s21, 1
    %p107 = por %p105, %p106
    %p109 = scmp.ne.s32.totalorder %s94, %s108
    %p110 = scmp.eq.s32.totalorder %s21, 0
    %p111 = por %p109, %p110
    %s113 = sadd.s32 %s112, 1
    %p116 = scmp.eq.s32.totalorder %s15, 1
    %p117 = scmp.ne.s32.totalorder %s112, %s114
    %p118 = scmp.eq.s32.totalorder %s15, 0
    %p119 = por %p117, %p118
    %p120 = scmp.ne.s32.totalorder %s112, %s114
    %p121 = scmp.eq.s32.totalorder %s20, 1
    %p122 = por %p120, %p121
    %p123 = scmp.ne.s32.totalorder %s114, %s115
    %p124 = scmp.eq.s32.totalorder %s20, 0
    %p125 = por %p123, %p124
    %p126 = scmp.ne.s32.totalorder %s114, %s115
    %p127 = scmp.eq.s32.totalorder %s21, 1
    %p128 = por %p126, %p127
    %p130 = scmp.ne.s32.totalorder %s115, %s129
    %p131 = scmp.eq.s32.totalorder %s21, 0
    %p132 = por %p130, %p131
    %s134 = sadd.s32 %s133, 1
    %p137 = scmp.eq.s32.totalorder %s15, 1
    %p138 = scmp.ne.s32.totalorder %s133, %s135
    %p139 = scmp.eq.s32.totalorder %s15, 0
    %p140 = por %p138, %p139
    %p141 = scmp.ne.s32.totalorder %s133, %s135
    %p142 = scmp.eq.s32.totalorder %s20, 1
    %p143 = por %p141, %p142
    %p144 = scmp.ne.s32.totalorder %s135, %s136
    %p145 = scmp.eq.s32.totalorder %s20, 0
    %p146 = por %p144, %p145
    %p147 = scmp.ne.s32.totalorder %s135, %s136
    %p148 = scmp.eq.s32.totalorder %s21, 1
    %p149 = por %p147, %p148
    %p151 = scmp.ne.s32.totalorder %s136, %s150
    %p152 = scmp.eq.s32.totalorder %s21, 0
    %p153 = por %p151, %p152
    %s155 = sadd.s32 %s154, 1
    %p158 = scmp.eq.s32.totalorder %s15, 1
    %p159 = scmp.ne.s32.totalorder %s154, %s156
    %p160 = scmp.eq.s32.totalorder %s15, 0
    %p161 = por %p159, %p160
    %p162 = scmp.ne.s32.totalorder %s154, %s156
    %p163 = scmp.eq.s32.totalorder %s20, 1
    %p164 = por %p162, %p163
    %p165 = scmp.ne.s32.totalorder %s156, %s157
    %p166 = scmp.eq.s32.totalorder %s20, 0
    %p167 = por %p165, %p166
    %p168 = scmp.ne.s32.totalorder %s156, %s157
    %p169 = scmp.eq.s32.totalorder %s21, 1
    %p170 = por %p168, %p169
    %p172 = scmp.ne.s32.totalorder %s157, %s171
    %p173 = scmp.eq.s32.totalorder %s21, 0
    %p174 = por %p172, %p173
    %s176 = sadd.s32 %s175, 1
    %p179 = scmp.eq.s32.totalorder %s15, 1
    %p180 = scmp.ne.s32.totalorder %s175, %s177
    %p181 = scmp.eq.s32.totalorder %s15, 0
    %p182 = por %p180, %p181
    %p183 = scmp.ne.s32.totalorder %s175, %s177
    %p184 = scmp.eq.s32.totalorder %s20, 1
    %p185 = por %p183, %p184
    %p186 = scmp.ne.s32.totalorder %s177, %s178
    %p187 = scmp.eq.s32.totalorder %s20, 0
    %p188 = por %p186, %p187
    %p189 = scmp.ne.s32.totalorder %s177, %s178
    %p190 = scmp.eq.s32.totalorder %s21, 1
    %p191 = por %p189, %p190
    %p193 = scmp.ne.s32.totalorder %s178, %s192
    %p194 = scmp.eq.s32.totalorder %s21, 0
    %p195 = por %p193, %p194
    %s196 = ssub.s32 %s22, %s34
    %s197 = ssub.s32 %s23, %s30
    %s198 = sor.u32 %s196, %s197
    %p199 = scmp.eq.s32.totalorder %s198, 0
    %s201 = sadd.s32 %s200, 1
    %s202 = scalar_select %p199, %s200, %s201
    %p205 = pneg %p199
    %p206 = scmp.eq.s32.totalorder %s15, 1
    %p207 = por %p205, %p206
    %p208 = scmp.ne.s32.totalorder %s200, %s203
    %p209 = scmp.eq.s32.totalorder %s15, 0
    %p210 = por %p208, %p209
    %p211 = scmp.ne.s32.totalorder %s200, %s203
    %p212 = scmp.eq.s32.totalorder %s20, 1
    %p213 = por %p211, %p212
    %p214 = scmp.ne.s32.totalorder %s203, %s204
    %p215 = scmp.eq.s32.totalorder %s20, 0
    %p216 = por %p214, %p215
    %p217 = scmp.ne.s32.totalorder %s203, %s204
    %p218 = scmp.eq.s32.totalorder %s21, 1
    %p219 = por %p217, %p218
    %p221 = scmp.ne.s32.totalorder %s204, %s220
    %p222 = scmp.eq.s32.totalorder %s21, 0
    %p223 = por %p221, %p222
    %p224 = scmp.le.s32.totalorder 1, %s15
    %p225 = scmp.lt.s32.totalorder %s15, 3
    %p226 = pnand %p224, %p225
    %p227 = pneg %p226
    // Predicated region
    $region9: #{_attention_block_call.1} parent=5 // pred_check
      _
    $region10: #{_attention_block_call.1} parent=5 // pred_check_branch
      %229 = sbr.rel (%p226) target = $region12
    $region11: #{_attention_block_call.1} parent=5 // pred_region
      %s230 = ssub.s32 %s15, 1
      // Predicated region
      $region13: #{_attention_block_call.1} parent=11 // pred_check
        %p231 = pneg %p104
      $region14: #{_attention_block_call.1} parent=11 // pred_check_branch
        %233 = sbr.rel (%p231) target = $region16
      $region15: #{_attention_block_call.1} parent=11 // pred_region
        _
      $region16: #{_attention_block_call.1} parent=11 // pred_fallthru
        _
      // Predicated region
      $region17: #{_attention_block_call.1} parent=11 // pred_check
        %p234 = pneg %p125
      $region18: #{_attention_block_call.1} parent=11 // pred_check_branch
        %236 = sbr.rel (%p234) target = $region20
      $region19: #{_attention_block_call.1} parent=11 // pred_region
        _
      $region20: #{_attention_block_call.1} parent=11 // pred_fallthru
        _
      // Predicated region
      $region21: #{_attention_block_call.1} parent=11 // pred_check
        %p237 = pneg %p146
      $region22: #{_attention_block_call.1} parent=11 // pred_check_branch
        %239 = sbr.rel (%p237) target = $region24
      $region23: #{_attention_block_call.1} parent=11 // pred_region
        _
      $region24: #{_attention_block_call.1} parent=11 // pred_fallthru
        _
      // Predicated region
      $region25: #{_attention_block_call.1} parent=11 // pred_check
        %p240 = pneg %p167
      $region26: #{_attention_block_call.1} parent=11 // pred_check_branch
        %242 = sbr.rel (%p240) target = $region28
      $region27: #{_attention_block_call.1} parent=11 // pred_region
        _
      $region28: #{_attention_block_call.1} parent=11 // pred_fallthru
        _
      // Predicated region
      $region29: #{_attention_block_call.1} parent=11 // pred_check
        %p243 = pneg %p188
      $region30: #{_attention_block_call.1} parent=11 // pred_check_branch
        %245 = sbr.rel (%p243) target = $region32
      $region31: #{_attention_block_call.1} parent=11 // pred_region
        _
      $region32: #{_attention_block_call.1} parent=11 // pred_fallthru
        _
    $region12: #{_attention_block_call.1} parent=5 // pred_fallthru
      _
    %p246 = scmp.lt.s32.totalorder %s15, 2
    // Predicated region
    $region33: #{_attention_block_call.1} parent=5 // pred_check
      %p247 = pneg %p246
    $region34: #{_attention_block_call.1} parent=5 // pred_check_branch
      %249 = sbr.rel (%p247) target = $region36
    $region35: #{_attention_block_call.1} parent=5 // pred_region
      // Predicated region
      $region37: #{_attention_block_call.1} parent=35 // pred_check
        %p250 = pneg %p49
      $region38: #{_attention_block_call.1} parent=35 // pred_check_branch
        %252 = sbr.rel (%p250) target = $region40
      $region39: #{_attention_block_call.1} parent=35 // pred_region
        %s253 = smul.u32 2, %s23
        %p254 = scmp.lt.s32.totalorder %s22, 1
        %s255 = scalar_select %p254, %s22, 1
        %p256 = scmp.lt.s32.totalorder %s253, 1
        %s257 = scalar_select %p256, %s253, 1
        %s258 = smul.addr %s255, 2
        %s259 = sadd.s32 %s257, %s258
        %s260 = smul.addr %s259, 4
        %s261 = scalar_lea.vmem %s0, %s260
        %s262 = smul.u32 2, %s23
      $region40: #{_attention_block_call.1} parent=35 // pred_fallthru
        _
      // Predicated region
      $region41: #{_attention_block_call.1} parent=35 // pred_check
        %p263 = pneg %p77
      $region42: #{_attention_block_call.1} parent=35 // pred_check_branch
        %265 = sbr.rel (%p263) target = $region44
      $region43: #{_attention_block_call.1} parent=35 // pred_region
        %s266 = smul.u32 2, %s23
        %p267 = scmp.lt.s32.totalorder %s22, 1
        %s268 = scalar_select %p267, %s22, 1
        %p269 = scmp.lt.s32.totalorder %s266, 1
        %s270 = scalar_select %p269, %s266, 1
        %s271 = smul.addr %s268, 2
        %s272 = sadd.s32 %s270, %s271
        %s273 = smul.addr %s272, 4
        %s274 = scalar_lea.vmem %s1, %s273
        %s275 = smul.u32 2, %s23
      $region44: #{_attention_block_call.1} parent=35 // pred_fallthru
        _
    $region36: #{_attention_block_call.1} parent=5 // pred_fallthru
      _
    %p276 = scmp.le.s32.totalorder 1, %s15
    %p277 = scmp.lt.s32.totalorder %s15, 3
    %p278 = pnand %p276, %p277
    %p279 = pneg %p278
    // Predicated region
    $region45: #{_attention_block_call.1} parent=5 // pred_check
      _
    $region46: #{_attention_block_call.1} parent=5 // pred_check_branch
      %281 = sbr.rel (%p278) target = $region48
    $region47: #{_attention_block_call.1} parent=5 // pred_region
      %s282 = ssub.s32 %s15, 1
      %s283 = smul.u32 2, %s25
      %p284 = scmp.lt.s32.totalorder %s24, 1
      %s285 = scalar_select %p284, %s24, 1
      %p286 = scmp.lt.s32.totalorder %s283, 1
      %s287 = scalar_select %p286, %s283, 1
      %s288 = smul.addr %s285, 2
      %s289 = sadd.s32 %s287, %s288
      %s290 = smul.addr %s289, 4
      %s291 = scalar_lea.vmem %s0, %s290
      %p292 = pneg %p55
      %p293 = pneg %p52
      %s294 = smul.u32 2, %s25
      %p295 = scmp.lt.s32.totalorder %s24, 1
      %s296 = scalar_select %p295, %s24, 1
      %p297 = scmp.lt.s32.totalorder %s294, 1
      %s298 = scalar_select %p297, %s294, 1
      %s299 = smul.addr %s296, 2
      %s300 = sadd.s32 %s298, %s299
      %s301 = smul.addr %s300, 4
      %s302 = scalar_lea.vmem %s1, %s301
      %p303 = pneg %p83
      %p304 = pneg %p80
      %p305 = pneg %p104
      %p306 = pneg %p101
      %p307 = pneg %p125
      %p308 = pneg %p122
      %p309 = pneg %p146
      %p310 = pneg %p143
      %p311 = pneg %p167
      %p312 = pneg %p164
      %p313 = pneg %p188
      %p314 = pneg %p185
      %p315 = pneg %p216
      %p316 = pneg %p213
      %s317 = smul.u32 2, %s25
      %p318 = scmp.lt.s32.totalorder %s24, 1
      %s319 = scalar_select %p318, %s24, 1
      %p320 = scmp.lt.s32.totalorder %s317, 1
      %s321 = scalar_select %p320, %s317, 1
      %s322 = smul.addr %s319, 2
      %s323 = sadd.s32 %s321, %s322
      %s324 = smul.addr %s323, 4
      %s325 = scalar_lea.vmem %s7, %s324
      %s326 = smul.u32 2, %s25
      %p327 = scmp.lt.s32.totalorder %s24, 1
      %s328 = scalar_select %p327, %s24, 1
      %p329 = scmp.lt.s32.totalorder %s326, 1
      %s330 = scalar_select %p329, %s326, 1
      %s331 = smul.addr %s328, 2
      %s332 = sadd.s32 %s330, %s331
      %s333 = smul.addr %s332, 4
      %s334 = scalar_lea.vmem %s0, %s333
      %s335 = smul.u32 2, %s25
      %s336 = smul.u32 2, %s25
      %p337 = scmp.lt.s32.totalorder %s24, 1
      %s338 = scalar_select %p337, %s24, 1
      %p339 = scmp.lt.s32.totalorder %s336, 1
      %s340 = scalar_select %p339, %s336, 1
      %s341 = smul.addr %s338, 2
      %s342 = sadd.s32 %s340, %s341
      %s343 = smul.addr %s342, 4
      %s344 = scalar_lea.vmem %s1, %s343
      %s345 = smul.u32 2, %s25
      %s346 = smul.u32 2, %s25
      %p347 = scmp.lt.s32.totalorder %s24, 1
      %s348 = scalar_select %p347, %s24, 1
      %p349 = scmp.lt.s32.totalorder %s346, 1
      %s350 = scalar_select %p349, %s346, 1
      %s351 = smul.addr %s348, 2
      %s352 = sadd.s32 %s350, %s351
      %s353 = smul.addr %s352, 4
      %s354 = scalar_lea.vmem %s7, %s353
      %s355 = smul.u32 2, %s25
      %v356 = vld [vmem:[%s344] sm:$0xff]
      %v357 = vld [vmem:[%s334] sm:$0xff]
      %v358 = vld [vmem:[%s2] sm:$0xff]
      %v359 = vld [vmem:[%s3] sm:$0xff]
      %v360 = vld [vmem:[%s4] sm:$0xff]
      %362 = vset.pattern.permute.xlu0 0
      %363 = vperm.xlu0 %362, %v358
      %v364 = vpop.permute.xlu0 %363
      %v367 = vlaneseq
      %v368 = vshrl.u32 %v367, 7
      %v369 = vsub.s32 0, %v368
      %v370 = vrot.slane %v357, %v369
      %v371 = vlaneseq
      %v372 = vshrl.u32 %v371, 7
      %v373 = vsub.s32 4, %v372
      %v374 = vrot.slane %v357, %v373
      %v377 = vlaneseq
      %v378 = vshrl.u32 %v377, 7
      %v379 = vsub.s32 0, %v378
      %v380 = vrot.slane %v370, %v379
      %v381 = vlaneseq
      %v382 = vshrl.u32 %v381, 7
      %v383 = vsub.s32 0, %v382
      %v384 = vrot.slane %v374, %v383
      %v385 = vmul.f32 %v364, %v380
      %v386 = vmul.f32 %v364, %v384
      %388 = vset.pattern.permute.xlu0 0
      %389 = vperm.xlu0 %388, %v360
      %v390 = vpop.permute.xlu0 %389
      %v392 = vadd.f32 %v390, %v385
      %v393 = vadd.f32 %v390, %v386
      %394 = vset.pattern.permute.xlu0 1
      %395 = vperm.xlu0 %394, %v358
      %v396 = vpop.permute.xlu0 %395
      %v398 = vlaneseq
      %v399 = vshrl.u32 %v398, 7
      %v400 = vsub.s32 1, %v399
      %v401 = vrot.slane %v357, %v400
      %v402 = vlaneseq
      %v403 = vshrl.u32 %v402, 7
      %v404 = vsub.s32 5, %v403
      %v405 = vrot.slane %v357, %v404
      %v408 = vlaneseq
      %v409 = vshrl.u32 %v408, 7
      %v410 = vsub.s32 1, %v409
      %v411 = vrot.slane %v401, %v410
      %v412 = vlaneseq
      %v413 = vshrl.u32 %v412, 7
      %v414 = vsub.s32 1, %v413
      %v415 = vrot.slane %v405, %v414
      %v416 = vmul.f32 %v396, %v411
      %v417 = vmul.f32 %v396, %v415
      %v418 = vadd.f32 %v392, %v416
      %v419 = vadd.f32 %v393, %v417
      %420 = vset.pattern.permute.xlu0 2
      %421 = vperm.xlu0 %420, %v358
      %v422 = vpop.permute.xlu0 %421
      %v424 = vlaneseq
      %v425 = vshrl.u32 %v424, 7
      %v426 = vsub.s32 2, %v425
      %v427 = vrot.slane %v357, %v426
      %v428 = vlaneseq
      %v429 = vshrl.u32 %v428, 7
      %v430 = vsub.s32 6, %v429
      %v431 = vrot.slane %v357, %v430
      %v434 = vlaneseq
      %v435 = vshrl.u32 %v434, 7
      %v436 = vsub.s32 2, %v435
      %v437 = vrot.slane %v427, %v436
      %v438 = vlaneseq
      %v439 = vshrl.u32 %v438, 7
      %v440 = vsub.s32 2, %v439
      %v441 = vrot.slane %v431, %v440
      %v442 = vmul.f32 %v422, %v437
      %v443 = vmul.f32 %v422, %v441
      %v444 = vadd.f32 %v418, %v442
      %v445 = vadd.f32 %v419, %v443
      %446 = vset.pattern.permute.xlu0 3
      %447 = vperm.xlu0 %446, %v358
      %v448 = vpop.permute.xlu0 %447
      %v450 = vlaneseq
      %v451 = vshrl.u32 %v450, 7
      %v452 = vsub.s32 3, %v451
      %v453 = vrot.slane %v357, %v452
      %v454 = vlaneseq
      %v455 = vshrl.u32 %v454, 7
      %v456 = vsub.s32 7, %v455
      %v457 = vrot.slane %v357, %v456
      %v460 = vlaneseq
      %v461 = vshrl.u32 %v460, 7
      %v462 = vsub.s32 3, %v461
      %v463 = vrot.slane %v453, %v462
      %v464 = vlaneseq
      %v465 = vshrl.u32 %v464, 7
      %v466 = vsub.s32 3, %v465
      %v467 = vrot.slane %v457, %v466
      %v468 = vmul.f32 %v448, %v463
      %v469 = vmul.f32 %v448, %v467
      %v470 = vadd.f32 %v444, %v468
      %v471 = vadd.f32 %v445, %v469
      %473 = vset.pattern.permute.xlu0 0
      %474 = vperm.xlu0 %473, %v359
      %v475 = vpop.permute.xlu0 %474
      %v478 = vlaneseq
      %v479 = vshrl.u32 %v478, 7
      %v480 = vsub.s32 0, %v479
      %v481 = vrot.slane %v356, %v480
      %v482 = vlaneseq
      %v483 = vshrl.u32 %v482, 7
      %v484 = vsub.s32 4, %v483
      %v485 = vrot.slane %v356, %v484
      %v488 = vlaneseq
      %v489 = vshrl.u32 %v488, 7
      %v490 = vsub.s32 0, %v489
      %v491 = vrot.slane %v481, %v490
      %v492 = vlaneseq
      %v493 = vshrl.u32 %v492, 7
      %v494 = vsub.s32 0, %v493
      %v495 = vrot.slane %v485, %v494
      %v496 = vmul.f32 %v475, %v491
      %v497 = vmul.f32 %v475, %v495
      %v498 = vadd.f32 %v470, %v496
      %v499 = vadd.f32 %v471, %v497
      %500 = vset.pattern.permute.xlu0 1
      %501 = vperm.xlu0 %500, %v359
      %v502 = vpop.permute.xlu0 %501
      %v504 = vlaneseq
      %v505 = vshrl.u32 %v504, 7
      %v506 = vsub.s32 1, %v505
      %v507 = vrot.slane %v356, %v506
      %v508 = vlaneseq
      %v509 = vshrl.u32 %v508, 7
      %v510 = vsub.s32 5, %v509
      %v511 = vrot.slane %v356, %v510
      %v514 = vlaneseq
      %v515 = vshrl.u32 %v514, 7
      %v516 = vsub.s32 1, %v515
      %v517 = vrot.slane %v507, %v516
      %v518 = vlaneseq
      %v519 = vshrl.u32 %v518, 7
      %v520 = vsub.s32 1, %v519
      %v521 = vrot.slane %v511, %v520
      %v522 = vmul.f32 %v502, %v517
      %v523 = vmul.f32 %v502, %v521
      %v524 = vadd.f32 %v498, %v522
      %v525 = vadd.f32 %v499, %v523
      %526 = vset.pattern.permute.xlu0 2
      %527 = vperm.xlu0 %526, %v359
      %v528 = vpop.permute.xlu0 %527
      %v530 = vlaneseq
      %v531 = vshrl.u32 %v530, 7
      %v532 = vsub.s32 2, %v531
      %v533 = vrot.slane %v356, %v532
      %v534 = vlaneseq
      %v535 = vshrl.u32 %v534, 7
      %v536 = vsub.s32 6, %v535
      %v537 = vrot.slane %v356, %v536
      %v540 = vlaneseq
      %v541 = vshrl.u32 %v540, 7
      %v542 = vsub.s32 2, %v541
      %v543 = vrot.slane %v533, %v542
      %v544 = vlaneseq
      %v545 = vshrl.u32 %v544, 7
      %v546 = vsub.s32 2, %v545
      %v547 = vrot.slane %v537, %v546
      %v548 = vmul.f32 %v528, %v543
      %v549 = vmul.f32 %v528, %v547
      %v550 = vadd.f32 %v524, %v548
      %v551 = vadd.f32 %v525, %v549
      %552 = vset.pattern.permute.xlu0 3
      %553 = vperm.xlu0 %552, %v359
      %v554 = vpop.permute.xlu0 %553
      %v556 = vlaneseq
      %v557 = vshrl.u32 %v556, 7
      %v558 = vsub.s32 3, %v557
      %v559 = vrot.slane %v356, %v558
      %v560 = vlaneseq
      %v561 = vshrl.u32 %v560, 7
      %v562 = vsub.s32 7, %v561
      %v563 = vrot.slane %v356, %v562
      %v566 = vlaneseq
      %v567 = vshrl.u32 %v566, 7
      %v568 = vsub.s32 3, %v567
      %v569 = vrot.slane %v559, %v568
      %v570 = vlaneseq
      %v571 = vshrl.u32 %v570, 7
      %v572 = vsub.s32 3, %v571
      %v573 = vrot.slane %v563, %v572
      %v574 = vmul.f32 %v554, %v569
      %v575 = vmul.f32 %v554, %v573
      %v576 = vadd.f32 %v550, %v574
      %v577 = vadd.f32 %v551, %v575
      %v578 = vmax.f32 %v576, 0.0
      %v579 = vmax.f32 %v577, 0.0
      %v580 = vld [vmem:[%s5] sm:$0xff]
      %582 = vset.pattern.permute.xlu0 0
      %583 = vperm.xlu0 %582, %v580
      %v584 = vpop.permute.xlu0 %583
      %v586 = vmul.f32 %v578, %v584
      %v587 = vmul.f32 %v579, %v584
      %v588 = vrot.slane %v586, 4
      %v589 = vadd.f32 %v586, %v588
      %v590 = vrot.slane %v589, 2
      %v591 = vadd.f32 %v589, %v590
      %v592 = vrot.slane %v591, 1
      %v593 = vadd.f32 %v591, %v592
      %v594 = vrot.slane %v587, 4
      %v595 = vadd.f32 %v587, %v594
      %v596 = vrot.slane %v595, 2
      %v597 = vadd.f32 %v595, %v596
      %v598 = vrot.slane %v597, 1
      %v599 = vadd.f32 %v597, %v598
      %v600 = vld [vmem:[#allocation2] sm:$0x1]
      %s601 = vtos %v600
      %v602 = vstv %s601
      %v603 = vadd.f32 %v593, %v602
      %v604 = vadd.f32 %v599, %v602
      %v605 = vxor.u32 %v603, 2147483648
      %v606 = vxor.u32 %v604, 2147483648
      %v607 = vmul.f32 %v605, 1.442695
      %v608 = vpow.pop %v607
      %v609 = vmul.f32 %v606, 1.442695
      %v610 = vpow.pop %v609
      %v611 = vadd.f32 %v608, 1.0
      %v612 = vadd.f32 %v610, 1.0
      %v613 = vrcp.pop %v611
      %v614 = vmul.f32 1.0, %v613
      %v615 = vrcp.pop %v612
      %v616 = vmul.f32 1.0, %v615
      %v619 = vcombine.low %v614, %v616
      %v621 = vmul.f32 %v356, %v619
      %622 = vst [vmem:[%s354] sm:$0xff] %v621
      %s623 = smul.u32 2, %s25
      %p624 = scmp.lt.s32.totalorder %s24, 1
      %s625 = scalar_select %p624, %s24, 1
      %p626 = scmp.lt.s32.totalorder %s623, 1
      %s627 = scalar_select %p626, %s623, 1
      %s628 = smul.addr %s625, 2
      %s629 = sadd.s32 %s627, %s628
      %s630 = smul.addr %s629, 4
      %s631 = scalar_lea.vmem %s7, %s630
      // Predicated region
      $region49: #{_attention_block_call.1} parent=47 // pred_check
        %p632 = pneg %p213
      $region50: #{_attention_block_call.1} parent=47 // pred_check_branch
        %634 = sbr.rel (%p632) target = $region52
      $region51: #{_attention_block_call.1} parent=47 // pred_region
        %s635 = smul.u32 2, %s25
      $region52: #{_attention_block_call.1} parent=47 // pred_fallthru
        _
    $region48: #{_attention_block_call.1} parent=5 // pred_fallthru
      _
    %p636 = scmp.le.s32.totalorder 2, %s15
    // Predicated region
    $region53: #{_attention_block_call.1} parent=5 // pred_check
      %p637 = pneg %p636
    $region54: #{_attention_block_call.1} parent=5 // pred_check_branch
      %639 = sbr.rel (%p637) target = $region56
    $region55: #{_attention_block_call.1} parent=5 // pred_region
      %s640 = ssub.s32 %s15, 2
      // Predicated region
      $region57: #{_attention_block_call.1} parent=55 // pred_check
        %p641 = pneg %p219
      $region58: #{_attention_block_call.1} parent=55 // pred_check_branch
        %643 = sbr.rel (%p641) target = $region60
      $region59: #{_attention_block_call.1} parent=55 // pred_region
        %s644 = smul.u32 2, %s27
        %p645 = scmp.lt.s32.totalorder %s26, 1
        %s646 = scalar_select %p645, %s26, 1
        %p647 = scmp.lt.s32.totalorder %s644, 1
        %s648 = scalar_select %p647, %s644, 1
        %s649 = smul.addr %s646, 2
        %s650 = sadd.s32 %s648, %s649
        %s651 = smul.addr %s650, 4
        %s652 = scalar_lea.vmem %s7, %s651
      $region60: #{_attention_block_call.1} parent=55 // pred_fallthru
        _
    $region56: #{_attention_block_call.1} parent=5 // pred_fallthru
      _
  $region6: #{_attention_block_call.1} parent=0 // loop_footer
    %s19 = sadd.s32 1, %s15
  $region7: #{_attention_block_call.1} parent=0 // loop_footer_branch
    %14 = sbr.rel target = $region3
  $region8: #{_attention_block_call.1} parent=0 // loop_exit
    _

</llo_original>
